<compile_context>
chip_gen: v7x
topology: tpu7x:2x2x1
jax: 0.10.0
libtpu: 0.0.40
codegen_flags: <defaults>
</compile_context>

<pallas_src>
import functools
import math

import jax
import jax.numpy as jnp
from jax import lax
from jax.experimental import pallas as pl
from jax.experimental.pallas import tpu as pltpu

# Sublane alignment for the per-channel-mean buffer: means start at sublane offset
# PAD_ALLOC (a multiple of 8), so mean stores are aligned/unmasked; the conv's logical
# zero padding is handled by always-zero border rows plus static tap-slice offsets.
PAD_ALLOC = 8


def _eca_kernel(w_ref, x_ref, out_ref, pad_ref, gate_ref, *, ksize, c_chunk):
    """ECA forward for one batch element.

    w_ref:    (ksize,) f32, SMEM             Conv1d(1, 1, k, bias=False) weight
    x_ref:    (1, C, H*W), VMEM              input block, spatial dim lane-dense
    out_ref:  (1, C, H*W), VMEM              gated output block
    pad_ref:  (C + 2*PAD_ALLOC, 1) f32 VMEM  per-channel means with zero borders
    gate_ref: (C, 1) f32, VMEM               sigmoid(conv1d(means))
    """
    C = out_ref.shape[1]
    hw = out_ref.shape[2]
    pad = ksize // 2
    n_chunks = C // c_chunk
    inv_hw = jnp.float32(1.0 / hw)

    # Keep the conv zero-padding region zero: only the small border strips are
    # written (the interior is fully overwritten below).  Done every step rather
    # than under `pl.when(program_id == 0)` so it stays correct when the
    # "parallel" batch axis is sharded across TensorCores (per-core scratch).
    pad_ref[0:PAD_ALLOC, :] = jnp.zeros((PAD_ALLOC, 1), jnp.float32)
    pad_ref[PAD_ALLOC + C:PAD_ALLOC + C + PAD_ALLOC, :] = jnp.zeros(
        (PAD_ALLOC, 1), jnp.float32)

    # ---- Global average pool, streamed over channel chunks -------------------
    def pool_body(i, carry):
        c0 = pl.multiple_of(i * c_chunk, c_chunk)
        xc = x_ref[0, pl.ds(c0, c_chunk), :].astype(jnp.float32)   # (chunk, HW)
        pad_ref[pl.ds(PAD_ALLOC + c0, c_chunk), :] = (
            jnp.sum(xc, axis=1, keepdims=True) * inv_hw)           # (chunk, 1)
        return carry

    lax.fori_loop(0, n_chunks, pool_body, 0, unroll=True)

    # ---- k-tap 1-D conv over channels (cross-correlation, zero padded) -------
    acc = jnp.zeros((C, 1), jnp.float32)
    for k in range(ksize):                        # ksize is tiny and static
        start = PAD_ALLOC - pad + k               # static sublane slice start
        acc = acc + w_ref[k] * pad_ref[start:start + C, :]
    gate_ref[...] = jax.nn.sigmoid(acc)           # (C, 1) f32

    # ---- Gating multiply, streamed per channel chunk, lane-dense stores ------
    def mul_body(i, carry):
        c0 = pl.multiple_of(i * c_chunk, c_chunk)
        g = gate_ref[pl.ds(c0, c_chunk), :].astype(out_ref.dtype)  # (chunk, 1)
        out_ref[0, pl.ds(c0, c_chunk), :] = x_ref[0, pl.ds(c0, c_chunk), :] * g
        return carry

    lax.fori_loop(0, n_chunks, mul_body, 0, unroll=True)


def eca_kernel_size(in_channels, gamma=2, b=1):
    """Same formula as the PyTorch module."""
    k = int(abs((math.log(in_channels, 2) + b) / gamma))
    return k if k % 2 else k + 1


def eca(x, weight):
    """ECA forward.  x: (N, C, H, W); weight: (1, 1, k) Conv1d weight (bias=False)."""
    N, C, H, W = x.shape
    ksize = int(weight.shape[-1])
    pad = ksize // 2
    assert ksize % 2 == 1 and pad <= PAD_ALLOC
    hw = H * W
    itemsize = jnp.dtype(x.dtype).itemsize

    # Channel-chunk size for the streamed pool / multiply loops.  Packing-aware so
    # sublane stores are unmasked for sub-32-bit dtypes (bf16 packs 16 rows / vreg).
    packing = max(1, 4 // itemsize)
    target = 8 * packing
    if C % target == 0:
        c_chunk = target
    elif C % 8 == 0:
        c_chunk = 8
    else:
        c_chunk = C

    x_flat = x.reshape(N, C, hw)                   # lane-dense spatial dim (free reshape)
    w_flat = weight.reshape(ksize).astype(jnp.float32)

    kernel = functools.partial(_eca_kernel, ksize=ksize, c_chunk=c_chunk)

    # Memory-bound op: read x once, write out once (+ tiny weight).
    block_bytes = C * hw * itemsize
    vmem_limit = int(max(32 * 1024 * 1024, min(64 * 1024 * 1024, 6 * block_bytes)))
    cost = pl.CostEstimate(
        flops=2 * N * C * hw + 2 * N * C * ksize,
        transcendentals=N * C,
        bytes_accessed=2 * N * C * hw * itemsize + ksize * 4,
    )

    out_flat = pl.pallas_call(
        kernel,
        out_shape=jax.ShapeDtypeStruct((N, C, hw), x.dtype),
        grid=(N,),
        in_specs=[
            pl.BlockSpec(memory_space=pltpu.MemorySpace.SMEM),      # conv1d weight
            pl.BlockSpec((1, C, hw), lambda n: (n, 0, 0)),          # x, one batch elem
        ],
        out_specs=pl.BlockSpec((1, C, hw), lambda n: (n, 0, 0)),
        scratch_shapes=[
            pltpu.VMEM((C + 2 * PAD_ALLOC, 1), jnp.float32),        # padded means
            pltpu.VMEM((C, 1), jnp.float32),                        # gate
        ],
        compiler_params=pltpu.CompilerParams(
            dimension_semantics=("parallel",),     # batch elems across TensorCores
            vmem_limit_bytes=vmem_limit,
        ),
        cost_estimate=cost,
    )(w_flat, x_flat)
    return out_flat.reshape(N, C, H, W)


def reference(x, weight):
    """Pure-JAX reference matching the PyTorch ECA forward."""
    N, C, H, W = x.shape
    ksize = weight.shape[-1]
    pad = ksize // 2
    pooled = jnp.mean(x.astype(jnp.float32), axis=(2, 3))           # (N, C)
    padded = jnp.pad(pooled, ((0, 0), (pad, pad)))                  # (N, C + 2*pad)
    w = weight.reshape(ksize).astype(jnp.float32)
    conv = sum(w[k] * padded[:, k:k + C] for k in range(ksize))     # (N, C)
    gate = jax.nn.sigmoid(conv).astype(x.dtype)
    return x * gate[:, :, None, None]


if __name__ == "__main__":
    key = jax.random.PRNGKey(0)
    kx, kw = jax.random.split(key, 2)

    N, C, H, W = 2, 16, 16, 16                 # C=16 -> ECA kernel_size = 3, padding = 1
    ksize = eca_kernel_size(C)

    x = jax.random.normal(kx, (N, C, H, W), dtype=jnp.float32)

    # Deterministic synthetic Conv1d(1, 1, ksize, bias=False) weight.
    bound = 1.0 / (1 * ksize) ** 0.5
    weight = jax.random.uniform(kw, (1, 1, ksize), jnp.float32, -bound, bound)

    # float32 path
    out = eca(x, weight)
    out = jax.block_until_ready(out)
    ref = reference(x, weight)
    assert out.shape == (N, C, H, W)
    assert jnp.allclose(out, ref, atol=1e-5, rtol=1e-5), "f32 mismatch vs reference"

    # bfloat16 path (packed-dtype chunking, gating stays in bf16 on the VPU)
    x_bf16 = x.astype(jnp.bfloat16)
    out_bf16 = jax.block_until_ready(eca(x_bf16, weight))
    ref_bf16 = reference(x_bf16, weight)
    assert jnp.allclose(out_bf16.astype(jnp.float32), ref_bf16.astype(jnp.float32),
                        atol=5e-2, rtol=5e-2), "bf16 mismatch vs reference"

    print("KERNEL_OK")
</pallas_src>

<mosaic_0001>
module attributes {stable_mosaic.version = 11 : i64} {
  func.func @_eca_kernel(%arg0: i32, %arg1: memref<3xf32, #tpu.memory_space<smem>>, %arg2: memref<1x16x256xf32, #tpu.memory_space<vmem>>, %arg3: memref<1x16x256xf32, #tpu.memory_space<vmem>>, %arg4: memref<32x1xf32, #tpu.memory_space<vmem>>, %arg5: memref<16x1xf32, #tpu.memory_space<vmem>>) attributes {dimension_semantics = [#tpu.dimension_semantics<parallel>], iteration_bounds = array<i64: 2>, scalar_prefetch = 0 : i64, scratch_operands = 2 : i64, tpu.core_type = #tpu.core_type<tc>, window_params = [{transform_indices = @transform_0, window_bounds = array<i64: 3>}, {transform_indices = @transform_1, window_bounds = array<i64: 1, 16, 256>}, {transform_indices = @transform_2, window_bounds = array<i64: 1, 16, 256>}]} {
    %cst = arith.constant 0.000000e+00 : f32
    %0 = vector.broadcast %cst : f32 to vector<8x1xf32>
    %c0 = arith.constant 0 : index
    %c0_0 = arith.constant 0 : index
    %1 = vector.load %arg4[%c0, %c0_0] : memref<32x1xf32, #tpu.memory_space<vmem>>, vector<8x1xf32>
    tpu.vector_store %arg4[%c0, %c0_0], %0 {strides = array<i32>} : memref<32x1xf32, #tpu.memory_space<vmem>>, vector<8x1xf32>,
    %cst_1 = arith.constant 0.000000e+00 : f32
    %2 = vector.broadcast %cst_1 : f32 to vector<8x1xf32>
    %c24 = arith.constant 24 : index
    %c0_2 = arith.constant 0 : index
    %3 = vector.load %arg4[%c24, %c0_2] : memref<32x1xf32, #tpu.memory_space<vmem>>, vector<8x1xf32>
    tpu.vector_store %arg4[%c24, %c0_2], %2 {strides = array<i32>} : memref<32x1xf32, #tpu.memory_space<vmem>>, vector<8x1xf32>,
    %cst_3 = arith.constant 3.906250e-03 : f32
    %c0_i32 = arith.constant 0 : i32
    %c8_i32 = arith.constant 8 : i32
    %4 = arith.muli %c0_i32, %c8_i32 : i32
    %5 = tpu.assume_multiple %4, 8 : i32
    %c0_4 = arith.constant 0 : index
    %6 = arith.index_cast %5 : i32 to index
    %c0_5 = arith.constant 0 : index
    %7 = vector.load %arg2[%c0_4, %6, %c0_5] : memref<1x16x256xf32, #tpu.memory_space<vmem>>, vector<1x8x256xf32>
    %8 = vector.shape_cast %7 : vector<1x8x256xf32> to vector<8x256xf32>
    %cst_6 = arith.constant dense<0.000000e+00> : vector<8xf32>
    %9 = vector.multi_reduction <add>, %8, %cst_6 [1] : vector<8x256xf32> to vector<8xf32>
    %10 = vector.shape_cast %9 : vector<8xf32> to vector<8x1xf32>
    %11 = vector.broadcast %cst_3 : f32 to vector<8x1xf32>
    %12 = arith.mulf %10, %11 : vector<8x1xf32>
    %c8_i32_7 = arith.constant 8 : i32
    %13 = arith.addi %c8_i32_7, %5 : i32
    %14 = arith.index_cast %13 : i32 to index
    %c0_8 = arith.constant 0 : index
    %15 = vector.load %arg4[%14, %c0_8] : memref<32x1xf32, #tpu.memory_space<vmem>>, vector<8x1xf32>
    tpu.vector_store %arg4[%14, %c0_8], %12 {strides = array<i32>} : memref<32x1xf32, #tpu.memory_space<vmem>>, vector<8x1xf32>,
    %c1_i32 = arith.constant 1 : i32
    %c8_i32_9 = arith.constant 8 : i32
    %16 = arith.muli %c1_i32, %c8_i32_9 : i32
    %17 = tpu.assume_multiple %16, 8 : i32
    %c0_10 = arith.constant 0 : index
    %18 = arith.index_cast %17 : i32 to index
    %c0_11 = arith.constant 0 : index
    %19 = vector.load %arg2[%c0_10, %18, %c0_11] : memref<1x16x256xf32, #tpu.memory_space<vmem>>, vector<1x8x256xf32>
    %20 = vector.shape_cast %19 : vector<1x8x256xf32> to vector<8x256xf32>
    %cst_12 = arith.constant dense<0.000000e+00> : vector<8xf32>
    %21 = vector.multi_reduction <add>, %20, %cst_12 [1] : vector<8x256xf32> to vector<8xf32>
    %22 = vector.shape_cast %21 : vector<8xf32> to vector<8x1xf32>
    %23 = vector.broadcast %cst_3 : f32 to vector<8x1xf32>
    %24 = arith.mulf %22, %23 : vector<8x1xf32>
    %c8_i32_13 = arith.constant 8 : i32
    %25 = arith.addi %c8_i32_13, %17 : i32
    %26 = arith.index_cast %25 : i32 to index
    %c0_14 = arith.constant 0 : index
    %27 = vector.load %arg4[%26, %c0_14] : memref<32x1xf32, #tpu.memory_space<vmem>>, vector<8x1xf32>
    tpu.vector_store %arg4[%26, %c0_14], %24 {strides = array<i32>} : memref<32x1xf32, #tpu.memory_space<vmem>>, vector<8x1xf32>,
    %c2_i32 = arith.constant 2 : i32
    %cst_15 = arith.constant 0.000000e+00 : f32
    %28 = vector.broadcast %cst_15 : f32 to vector<16x1xf32>
    %c0_16 = arith.constant 0 : index
    %29 = memref.load %arg1[%c0_16] : memref<3xf32, #tpu.memory_space<smem>>
    %c7 = arith.constant 7 : index
    %c0_17 = arith.constant 0 : index
    %30 = vector.load %arg4[%c7, %c0_17] : memref<32x1xf32, #tpu.memory_space<vmem>>, vector<16x1xf32>
    %31 = vector.broadcast %29 : f32 to vector<16x1xf32>
    %32 = arith.mulf %31, %30 : vector<16x1xf32>
    %33 = arith.addf %28, %32 : vector<16x1xf32>
    %c1 = arith.constant 1 : index
    %34 = memref.load %arg1[%c1] : memref<3xf32, #tpu.memory_space<smem>>
    %c8 = arith.constant 8 : index
    %c0_18 = arith.constant 0 : index
    %35 = vector.load %arg4[%c8, %c0_18] : memref<32x1xf32, #tpu.memory_space<vmem>>, vector<16x1xf32>
    %36 = vector.broadcast %34 : f32 to vector<16x1xf32>
    %37 = arith.mulf %36, %35 : vector<16x1xf32>
    %38 = arith.addf %33, %37 : vector<16x1xf32>
    %c2 = arith.constant 2 : index
    %39 = memref.load %arg1[%c2] : memref<3xf32, #tpu.memory_space<smem>>
    %c9 = arith.constant 9 : index
    %c0_19 = arith.constant 0 : index
    %40 = vector.load %arg4[%c9, %c0_19] : memref<32x1xf32, #tpu.memory_space<vmem>>, vector<16x1xf32>
    %41 = vector.broadcast %39 : f32 to vector<16x1xf32>
    %42 = arith.mulf %41, %40 : vector<16x1xf32>
    %43 = arith.addf %38, %42 : vector<16x1xf32>
    %44 = arith.negf %43 : vector<16x1xf32>
    %45 = math.exp %44 : vector<16x1xf32>
    %cst_20 = arith.constant 1.000000e+00 : f32
    %46 = vector.broadcast %cst_20 : f32 to vector<16x1xf32>
    %47 = arith.addf %46, %45 : vector<16x1xf32>
    %48 = arith.divf %46, %47 : vector<16x1xf32>
    %c0_21 = arith.constant 0 : index
    %c0_22 = arith.constant 0 : index
    %49 = vector.load %arg5[%c0_21, %c0_22] : memref<16x1xf32, #tpu.memory_space<vmem>>, vector<16x1xf32>
    tpu.vector_store %arg5[%c0_21, %c0_22], %48 {strides = array<i32>} : memref<16x1xf32, #tpu.memory_space<vmem>>, vector<16x1xf32>,
    %c0_i32_23 = arith.constant 0 : i32
    %c8_i32_24 = arith.constant 8 : i32
    %50 = arith.muli %c0_i32_23, %c8_i32_24 : i32
    %51 = tpu.assume_multiple %50, 8 : i32
    %52 = arith.index_cast %51 : i32 to index
    %c0_25 = arith.constant 0 : index
    %53 = vector.load %arg5[%52, %c0_25] : memref<16x1xf32, #tpu.memory_space<vmem>>, vector<8x1xf32>
    %c0_26 = arith.constant 0 : index
    %54 = arith.index_cast %51 : i32 to index
    %c0_27 = arith.constant 0 : index
    %55 = vector.load %arg2[%c0_26, %54, %c0_27] : memref<1x16x256xf32, #tpu.memory_space<vmem>>, vector<1x8x256xf32>
    %56 = vector.shape_cast %55 : vector<1x8x256xf32> to vector<8x256xf32>
    %57 = vector.broadcast %53 : vector<8x1xf32> to vector<8x256xf32>
    %58 = arith.mulf %56, %57 : vector<8x256xf32>
    %c0_28 = arith.constant 0 : index
    %59 = arith.index_cast %51 : i32 to index
    %c0_29 = arith.constant 0 : index
    %60 = vector.load %arg3[%c0_28, %59, %c0_29] : memref<1x16x256xf32, #tpu.memory_space<vmem>>, vector<1x8x256xf32>
    %61 = vector.shape_cast %60 : vector<1x8x256xf32> to vector<8x256xf32>
    %62 = vector.shape_cast %58 : vector<8x256xf32> to vector<1x8x256xf32>
    tpu.vector_store %arg3[%c0_28, %59, %c0_29], %62 {strides = array<i32>} : memref<1x16x256xf32, #tpu.memory_space<vmem>>, vector<1x8x256xf32>,
    %c1_i32_30 = arith.constant 1 : i32
    %c8_i32_31 = arith.constant 8 : i32
    %63 = arith.muli %c1_i32_30, %c8_i32_31 : i32
    %64 = tpu.assume_multiple %63, 8 : i32
    %65 = arith.index_cast %64 : i32 to index
    %c0_32 = arith.constant 0 : index
    %66 = vector.load %arg5[%65, %c0_32] : memref<16x1xf32, #tpu.memory_space<vmem>>, vector<8x1xf32>
    %c0_33 = arith.constant 0 : index
    %67 = arith.index_cast %64 : i32 to index
    %c0_34 = arith.constant 0 : index
    %68 = vector.load %arg2[%c0_33, %67, %c0_34] : memref<1x16x256xf32, #tpu.memory_space<vmem>>, vector<1x8x256xf32>
    %69 = vector.shape_cast %68 : vector<1x8x256xf32> to vector<8x256xf32>
    %70 = vector.broadcast %66 : vector<8x1xf32> to vector<8x256xf32>
    %71 = arith.mulf %69, %70 : vector<8x256xf32>
    %c0_35 = arith.constant 0 : index
    %72 = arith.index_cast %64 : i32 to index
    %c0_36 = arith.constant 0 : index
    %73 = vector.load %arg3[%c0_35, %72, %c0_36] : memref<1x16x256xf32, #tpu.memory_space<vmem>>, vector<1x8x256xf32>
    %74 = vector.shape_cast %73 : vector<1x8x256xf32> to vector<8x256xf32>
    %75 = vector.shape_cast %71 : vector<8x256xf32> to vector<1x8x256xf32>
    tpu.vector_store %arg3[%c0_35, %72, %c0_36], %75 {strides = array<i32>} : memref<1x16x256xf32, #tpu.memory_space<vmem>>, vector<1x8x256xf32>,
    %c2_i32_37 = arith.constant 2 : i32
    return
  }
  func.func @transform_0(%arg0: i32) -> i32 {
    %c0_i32 = arith.constant 0 : i32
    %c0_i32_0 = arith.constant 0 : i32
    return %c0_i32 : i32
  }
  func.func @transform_1(%arg0: i32) -> (i32, i32, i32) {
    %c0_i32 = arith.constant 0 : i32
    %c0_i32_0 = arith.constant 0 : i32
    %c0_i32_1 = arith.constant 0 : i32
    return %arg0, %c0_i32, %c0_i32_0 : i32, i32, i32
  }
  func.func @transform_2(%arg0: i32) -> (i32, i32, i32) {
    %c0_i32 = arith.constant 0 : i32
    %c0_i32_0 = arith.constant 0 : i32
    %c0_i32_1 = arith.constant 0 : i32
    return %arg0, %c0_i32, %c0_i32_0 : i32, i32, i32
  }
}

</mosaic_0001>

<llo_original>
// kernel: tpu_custom_call.1
$region0: #{tpu_custom_call.1}
  #allocation0 [shape = 'u32[]', space=smem, size = 0x4, offset = 0x4, fixed_abs, tag = 'smem constant byte address 0x4 - core index']
  #allocation1 [shape = 'u32[144,128]{1,0:T(1,128)}', space=vmem, size = 0x12000, scoped, tag = 'internal scratch']
  #allocation2 [shape = 'f32[32,1]{1,0:T(8,128)}', space=vmem, size = 0x4000, scoped, tag = 'scratch operand']
  #allocation3 [shape = 'f32[16,1]{1,0:T(8,128)}', space=vmem, size = 0x2000, scoped, tag = 'scratch operand']
  %s0 = inlined_call_operand.hbm [shape: f32[3], index: 0, kind: input, shape index: {}]
  %s1 = inlined_call_operand.hbm [shape: f32[2,16,256], index: 1, kind: input, shape index: {}]
  %s2 = inlined_call_operand.hbm [shape: f32[2,16,256], index: 2, kind: output, shape index: {}]
  %s3 = sld [smem:[#allocation0]]
  $region49: #{tpu_custom_call.1} parent=0
    _
  %s5 = ssub.s32 1, %s3
  %s6 = scalar_select 0, %s5, %s3
  $region1: #{tpu_custom_call.1} parent=0
    #allocation4 [shape = 'u8[512]{0}', space=smem, size = 0x200, scoped, tag = 'input window, operand 0, single buffered']
    #allocation5 [shape = 's32[2]{0}', space=sflag, size = 0x8, scoped, tag = 'scoped memory for tpu_custom_call.1']
    #allocation6 [shape = 's32[2]{0}', space=sflag, size = 0x8, scoped, tag = 'scoped memory for tpu_custom_call.1']
    #allocation7 [shape = 's32[2]{0}', space=sflag, size = 0x8, scoped, tag = 'scoped memory for tpu_custom_call.1']
    #allocation8 [shape = 'u8[32768]{0}', space=vmem, size = 0x8000, scoped, tag = 'input window, operand 1']
    #allocation9 [shape = 'u8[32768]{0}', space=vmem, size = 0x8000, scoped, tag = 'output window, operand 0']
    %7 = vsyncpa [#allocation7], 0
    %8 = vsyncpa [#allocation5], 0
    %s9 = scalar_lea.sflag [#allocation5], 1
    %10 = vsyncpa %s9, 0
    %11 = vsyncpa [#allocation6], 0
    %s12 = scalar_lea.sflag [#allocation6], 1
    %13 = vsyncpa %s12, 0
    loop: start=0, step=1, limit=4
    $region2: #{tpu_custom_call.1} parent=1 // loop_pre_header
      _
    $region3: #{tpu_custom_call.1} parent=1 // loop_header
      %s15 = sphi 0, %s19
      %p16 = scmp.ge.s32.totalorder %s15, 4
      %s23 = sphi 0, %s23
      %s25 = sphi 0, %s23
      %s26 = sphi 0, %s25
      %s40 = sphi 0, %s26
      %s46 = sphi 0, %s48
      %s49 = sphi 0, %s46
      %s50 = sphi 0, %s49
      %s66 = sphi 0, %s50
      %s72 = sphi 0, %s74
      %s75 = sphi 0, %s72
      %s76 = sphi 0, %s75
      %s92 = sphi 0, %s76
    $region4: #{tpu_custom_call.1} parent=1 // loop_header_branch
      %18 = sbr.rel (%p16) target = $region8
    $region5: #{tpu_custom_call.1} parent=1 // loop_body
      %s20 = ssub.s32 %s15, 1
      %s21 = ssub.s32 %s15, 2
      %s22 = sadd.s32 %s15, 1
      %s24 = sadd.s32 %s23, 1
      %p27 = scmp.eq.s32.totalorder %s15, 1
      %p28 = scmp.ne.s32.totalorder %s23, %s25
      %p29 = scmp.eq.s32.totalorder %s15, 0
      %p30 = por %p28, %p29
      %p31 = scmp.ne.s32.totalorder %s23, %s25
      %p32 = scmp.eq.s32.totalorder %s20, 1
      %p33 = por %p31, %p32
      %p34 = scmp.ne.s32.totalorder %s25, %s26
      %p35 = scmp.eq.s32.totalorder %s20, 0
      %p36 = por %p34, %p35
      %p37 = scmp.ne.s32.totalorder %s25, %s26
      %p38 = scmp.eq.s32.totalorder %s21, 1
      %p39 = por %p37, %p38
      %p41 = scmp.ne.s32.totalorder %s26, %s40
      %p42 = scmp.eq.s32.totalorder %s21, 0
      %p43 = por %p41, %p42
      %s44 = ssub.s32 %s15, %s22
      %p45 = scmp.eq.s32.totalorder %s44, 0
      %s47 = sadd.s32 %s46, 1
      %s48 = scalar_select %p45, %s46, %s47
      %p51 = pneg %p45
      %p52 = scmp.eq.s32.totalorder %s15, 1
      %p53 = por %p51, %p52
      %p54 = scmp.ne.s32.totalorder %s46, %s49
      %p55 = scmp.eq.s32.totalorder %s15, 0
      %p56 = por %p54, %p55
      %p57 = scmp.ne.s32.totalorder %s46, %s49
      %p58 = scmp.eq.s32.totalorder %s20, 1
      %p59 = por %p57, %p58
      %p60 = scmp.ne.s32.totalorder %s49, %s50
      %p61 = scmp.eq.s32.totalorder %s20, 0
      %p62 = por %p60, %p61
      %p63 = scmp.ne.s32.totalorder %s49, %s50
      %p64 = scmp.eq.s32.totalorder %s21, 1
      %p65 = por %p63, %p64
      %p67 = scmp.ne.s32.totalorder %s50, %s66
      %p68 = scmp.eq.s32.totalorder %s21, 0
      %p69 = por %p67, %p68
      %s70 = ssub.s32 %s15, %s22
      %p71 = scmp.eq.s32.totalorder %s70, 0
      %s73 = sadd.s32 %s72, 1
      %s74 = scalar_select %p71, %s72, %s73
      %p77 = pneg %p71
      %p78 = scmp.eq.s32.totalorder %s15, 1
      %p79 = por %p77, %p78
      %p80 = scmp.ne.s32.totalorder %s72, %s75
      %p81 = scmp.eq.s32.totalorder %s15, 0
      %p82 = por %p80, %p81
      %p83 = scmp.ne.s32.totalorder %s72, %s75
      %p84 = scmp.eq.s32.totalorder %s20, 1
      %p85 = por %p83, %p84
      %p86 = scmp.ne.s32.totalorder %s75, %s76
      %p87 = scmp.eq.s32.totalorder %s20, 0
      %p88 = por %p86, %p87
      %p89 = scmp.ne.s32.totalorder %s75, %s76
      %p90 = scmp.eq.s32.totalorder %s21, 1
      %p91 = por %p89, %p90
      %p93 = scmp.ne.s32.totalorder %s76, %s92
      %p94 = scmp.eq.s32.totalorder %s21, 0
      %p95 = por %p93, %p94
      %p96 = scmp.le.s32.totalorder 1, %s15
      %p97 = scmp.lt.s32.totalorder %s15, 3
      %p98 = pnand %p96, %p97
      %p99 = pneg %p98
      // Predicated region
      $region9: #{tpu_custom_call.1} parent=5 // pred_check
        _
      $region10: #{tpu_custom_call.1} parent=5 // pred_check_branch
        %101 = sbr.rel (%p98) target = $region12
      $region11: #{tpu_custom_call.1} parent=5 // pred_region
        %s102 = ssub.s32 %s15, 1
        // Predicated region
        $region13: #{tpu_custom_call.1} parent=11 // pred_check
          %p103 = pneg %p36
        $region14: #{tpu_custom_call.1} parent=11 // pred_check_branch
          %105 = sbr.rel (%p103) target = $region16
        $region15: #{tpu_custom_call.1} parent=11 // pred_region
          %s107 = ssub.s32 16, 16
          %108 = vsyncadd [#allocation7], %s107
          %111 = dma.hbm_to_smem %s0, 16, [#allocation4], [#allocation7]
        $region16: #{tpu_custom_call.1} parent=11 // pred_fallthru
          _
      $region12: #{tpu_custom_call.1} parent=5 // pred_fallthru
        _
      %p112 = scmp.lt.s32.totalorder %s15, 2
      // Predicated region
      $region17: #{tpu_custom_call.1} parent=5 // pred_check
        %p113 = pneg %p112
      $region18: #{tpu_custom_call.1} parent=5 // pred_check_branch
        %115 = sbr.rel (%p113) target = $region20
      $region19: #{tpu_custom_call.1} parent=5 // pred_region
        // Predicated region
        $region21: #{tpu_custom_call.1} parent=19 // pred_check
          %p116 = pneg %p56
        $region22: #{tpu_custom_call.1} parent=19 // pred_check_branch
          %118 = sbr.rel (%p116) target = $region24
        $region23: #{tpu_custom_call.1} parent=19 // pred_region
          %s119 = sand.u32 %s46, 1
          %s120 = scalar_lea.sflag [#allocation5], %s119
          %s121 = sand.u32 %s46, 1
          %s122 = smul.addr %s121, 32
          %s123 = scalar_lea.vmem [#allocation8], %s122
          %s125 = ssub.s32 512, 512
          %126 = vsyncadd %s120, %s125
          %s127 = smul.addr %s15, 4
          %s128 = smul.addr %s127, 128
          %s129 = scalar_lea.hbm %s1, %s128
          %s130 = sshll.u32 %s123, 4
          %s131 = int_to_ptr.vmem [resolvable:$true] %s130
          %136 = dma.hbm_to_vmem [thread:$0]  %s129, 512, %s131, %s120, 256, 256, 16
        $region24: #{tpu_custom_call.1} parent=19 // pred_fallthru
          _
      $region20: #{tpu_custom_call.1} parent=5 // pred_fallthru
        _
      %p137 = scmp.le.s32.totalorder 1, %s15
      %p138 = scmp.lt.s32.totalorder %s15, 3
      %p139 = pnand %p137, %p138
      %p140 = pneg %p139
      // Predicated region
      $region25: #{tpu_custom_call.1} parent=5 // pred_check
        _
      $region26: #{tpu_custom_call.1} parent=5 // pred_check_branch
        %142 = sbr.rel (%p139) target = $region28
      $region27: #{tpu_custom_call.1} parent=5 // pred_region
        %s143 = ssub.s32 %s15, 1
        // Predicated region
        $region29: #{tpu_custom_call.1} parent=27 // pred_check
          %p144 = pneg %p36
        $region30: #{tpu_custom_call.1} parent=27 // pred_check_branch
          %146 = sbr.rel (%p144) target = $region32
        $region31: #{tpu_custom_call.1} parent=27 // pred_region
          %147 = dma.done [#allocation7], 16
        $region32: #{tpu_custom_call.1} parent=27 // pred_fallthru
          _
        %s148 = sand.u32 %s49, 1
        %s149 = scalar_lea.sflag [#allocation5], %s148
        %s150 = sand.u32 %s49, 1
        %s151 = smul.addr %s150, 32
        %s152 = scalar_lea.vmem [#allocation8], %s151
        // Predicated region
        $region33: #{tpu_custom_call.1} parent=27 // pred_check
          %p153 = pneg %p62
        $region34: #{tpu_custom_call.1} parent=27 // pred_check_branch
          %155 = sbr.rel (%p153) target = $region36
        $region35: #{tpu_custom_call.1} parent=27 // pred_region
          %156 = dma.done %s149, 512
        $region36: #{tpu_custom_call.1} parent=27 // pred_fallthru
          _
        %157 = sfence
        %p158 = pneg %p36
        %p159 = pneg %p33
        %s160 = sand.u32 %s49, 1
        %s161 = scalar_lea.sflag [#allocation5], %s160
        %s162 = sand.u32 %s49, 1
        %s163 = smul.addr %s162, 32
        %s164 = scalar_lea.vmem [#allocation8], %s163
        %p165 = pneg %p62
        %p166 = pneg %p59
        %p167 = pneg %p88
        %p168 = pneg %p85
        %s169 = sand.u32 %s75, 1
        %s170 = scalar_lea.sflag [#allocation6], %s169
        %s171 = sand.u32 %s75, 1
        %s172 = smul.addr %s171, 32
        %s173 = scalar_lea.vmem [#allocation9], %s172
        %vm174 = vcmask 7168
        %175 = vst.msk [vmem:[#allocation2] sm:$0xff] %vm174, 0.0
        %176 = vst.msk [vmem:[#allocation2 + $0x18] sm:$0xff] %vm174, 0.0
        %s177 = smul.u32 0, 2
        %s178 = smul.addr %s177, 8
        %s179 = scalar_lea.vmem %s152, %s178 [#allocation8]
        %v180 = vld [vmem:[%s179] sm:$0xff]
        %v181 = vld [vmem:[%s179 + $0x8] sm:$0xff]
        %v182 = vadd.f32 %v180, %v181
        %183 = vadd.xlane.f32.xlu0 %v182
        %v184 = vpop.xlane.xlu0 %183
        %v185 = vmul.f32 %v184, 0.00390625
        %s186 = sadd.s32 0, 8
        %s187 = scalar_lea.vmem [#allocation2], %s186
        %188 = vst.msk [vmem:[%s187] sm:$0xff] %vm174, %v185
        %s189 = smul.u32 1, 2
        %s190 = smul.addr %s189, 8
        %s191 = scalar_lea.vmem %s152, %s190 [#allocation8]
        %v192 = vld [vmem:[%s191] sm:$0xff]
        %v193 = vld [vmem:[%s191 + $0x8] sm:$0xff]
        %v194 = vadd.f32 %v192, %v193
        %195 = vadd.xlane.f32.xlu0 %v194
        %v196 = vpop.xlane.xlu0 %195
        %v197 = vmul.f32 %v196, 0.00390625
        %s198 = sadd.s32 8, 8
        %s199 = scalar_lea.vmem [#allocation2], %s198
        %200 = vst.msk [vmem:[%s199] sm:$0xff] %vm174, %v197
        %s201 = sld [smem:[#allocation4]]
        %v202 = vld [vmem:[#allocation2 + $0x7] sm:$0xff]
        %v203 = vld [vmem:[#allocation2 + $0xf] sm:$0xff]
        %v204 = vstv %s201
        %v205 = vmul.f32 %v204, %v202
        %v206 = vmul.f32 %v204, %v203
        %v207 = vadd.f32 %v205, 0.0
        %v208 = vadd.f32 %v206, 0.0
        %s209 = sld [smem:[#allocation4 + $0x1]]
        %v210 = vld [vmem:[#allocation2 + $0x8] sm:$0xff]
        %v211 = vld [vmem:[#allocation2 + $0x10] sm:$0xff]
        %v212 = vstv %s209
        %v213 = vmul.f32 %v212, %v210
        %v214 = vmul.f32 %v212, %v211
        %v215 = vadd.f32 %v207, %v213
        %v216 = vadd.f32 %v208, %v214
        %s217 = sld [smem:[#allocation4 + $0x2]]
        %v218 = vld [vmem:[#allocation2 + $0x9] sm:$0xff]
        %v219 = vld [vmem:[#allocation2 + $0x11] sm:$0xff]
        %v220 = vstv %s217
        %v221 = vmul.f32 %v220, %v218
        %v222 = vmul.f32 %v220, %v219
        %v223 = vadd.f32 %v215, %v221
        %v224 = vadd.f32 %v216, %v222
        %v225 = vxor.u32 %v223, 2147483648
        %v226 = vxor.u32 %v224, 2147483648
        %v227 = vmul.f32 %v225, 1.442695
        %v228 = vpow.pop %v227
        %v229 = vmul.f32 %v226, 1.442695
        %v230 = vpow.pop %v229
        %v231 = vadd.f32 %v228, 1.0
        %v232 = vadd.f32 %v230, 1.0
        %v233 = vrcp.pop %v231
        %v234 = vmul.f32 1.0, %v233
        %v235 = vrcp.pop %v232
        %v236 = vmul.f32 1.0, %v235
        %237 = vst.msk [vmem:[#allocation3] sm:$0xff] %vm174, %v234
        %238 = vst.msk [vmem:[#allocation3 + $0x8] sm:$0xff] %vm174, %v236
        %v239 = vld [vmem:[#allocation3] sm:$0xff]
        %v240 = vld [vmem:[%s179] sm:$0xff]
        %v241 = vld [vmem:[%s179 + $0x8] sm:$0xff]
        %243 = vset.pattern.permute.xlu0 0
        %244 = vperm.xlu0 %243, %v239
        %v245 = vpop.permute.xlu0 %244
        %v247 = vmul.f32 %v240, %v245
        %v248 = vmul.f32 %v241, %v245
        %s249 = smul.addr %s177, 8
        %s250 = scalar_lea.vmem %s173, %s249 [#allocation9]
        %251 = vst [vmem:[%s250] sm:$0xff] %v247
        %252 = vst [vmem:[%s250 + $0x8] sm:$0xff] %v248
        %s253 = scalar_lea.vmem [#allocation3], 8
        %v254 = vld [vmem:[%s253] sm:$0xff]
        %v255 = vld [vmem:[%s191] sm:$0xff]
        %v256 = vld [vmem:[%s191 + $0x8] sm:$0xff]
        %258 = vset.pattern.permute.xlu0 0
        %259 = vperm.xlu0 %258, %v254
        %v260 = vpop.permute.xlu0 %259
        %v262 = vmul.f32 %v255, %v260
        %v263 = vmul.f32 %v256, %v260
        %s264 = smul.addr %s189, 8
        %s265 = scalar_lea.vmem %s173, %s264 [#allocation9]
        %266 = vst [vmem:[%s265] sm:$0xff] %v262
        %267 = vst [vmem:[%s265 + $0x8] sm:$0xff] %v263
        %s268 = sand.u32 %s75, 1
        %s269 = scalar_lea.sflag [#allocation6], %s268
        %s270 = sand.u32 %s75, 1
        %s271 = smul.addr %s270, 32
        %s272 = scalar_lea.vmem [#allocation9], %s271
        // Predicated region
        $region37: #{tpu_custom_call.1} parent=27 // pred_check
          %p273 = pneg %p85
        $region38: #{tpu_custom_call.1} parent=27 // pred_check_branch
          %275 = sbr.rel (%p273) target = $region40
        $region39: #{tpu_custom_call.1} parent=27 // pred_region
          %s277 = ssub.s32 512, 512
          %278 = vsyncadd %s269, %s277
          %s279 = smul.addr %s20, 4
          %s280 = smul.addr %s279, 128
          %s281 = scalar_lea.hbm %s2, %s280
          %s282 = sshll.u32 %s272, 4
          %s283 = int_to_ptr.vmem [resolvable:$true] %s282
          %288 = dma.vmem_to_hbm [thread:$0]  %s283, 512, %s281, %s269, 256, 256, 16
        $region40: #{tpu_custom_call.1} parent=27 // pred_fallthru
          _
      $region28: #{tpu_custom_call.1} parent=5 // pred_fallthru
        _
      %p289 = scmp.le.s32.totalorder 2, %s15
      // Predicated region
      $region41: #{tpu_custom_call.1} parent=5 // pred_check
        %p290 = pneg %p289
      $region42: #{tpu_custom_call.1} parent=5 // pred_check_branch
        %292 = sbr.rel (%p290) target = $region44
      $region43: #{tpu_custom_call.1} parent=5 // pred_region
        %s293 = ssub.s32 %s15, 2
        // Predicated region
        $region45: #{tpu_custom_call.1} parent=43 // pred_check
          %p294 = pneg %p91
        $region46: #{tpu_custom_call.1} parent=43 // pred_check_branch
          %296 = sbr.rel (%p294) target = $region48
        $region47: #{tpu_custom_call.1} parent=43 // pred_region
          %s297 = sand.u32 %s76, 1
          %s298 = scalar_lea.sflag [#allocation6], %s297
          %s299 = sand.u32 %s76, 1
          %s300 = smul.addr %s299, 32
          %s301 = scalar_lea.vmem [#allocation9], %s300
          %302 = dma.done %s298, 512
        $region48: #{tpu_custom_call.1} parent=43 // pred_fallthru
          _
      $region44: #{tpu_custom_call.1} parent=5 // pred_fallthru
        _
    $region6: #{tpu_custom_call.1} parent=1 // loop_footer
      %s19 = sadd.s32 1, %s15
    $region7: #{tpu_custom_call.1} parent=1 // loop_footer_branch
      %14 = sbr.rel target = $region3
    $region8: #{tpu_custom_call.1} parent=1 // loop_exit
      _
    %303 = vsyncpa [#allocation5], 1
    %s304 = scalar_lea.sflag [#allocation5], 1
    %305 = vsyncpa %s304, 1
    %306 = vsyncpa [#allocation6], 1
    %s307 = scalar_lea.sflag [#allocation6], 1
    %308 = vsyncpa %s307, 1
    %309 = vsyncpa [#allocation7], 1
    %s310 = scalar_lea.sflag [#allocation7], 1
    %311 = vsyncpa %s310, 1

</llo_original>
